<compile_context>
chip_gen: v6e
topology: v6e:2x2x1
jax: 0.10.0
libtpu: 0.0.40
codegen_flags: <defaults>
</compile_context>

<pallas_src>
import jax
import jax.numpy as jnp
from jax.experimental import pallas as pl
from jax.experimental.pallas import tpu as pltpu

EPS = 1e-6  # matches the PyTorch module's default eps


def _round_up(x, m):
    return ((x + m - 1) // m) * m


def _coors_norm_kernel(x_ref, o_ref):
    x = x_ref[...].astype(jnp.float32)                 # (D, tile_c), lane-dense
    d = x.shape[0]
    sq = x[0:1, :] * x[0:1, :]                          # (1, tile_c)
    for i in range(1, d):                               # static unroll (D is tiny)
        sq = sq + x[i:i + 1, :] * x[i:i + 1, :]
    # x / clamp(||x||, eps)  ==  x * rsqrt(max(||x||^2, eps^2))
    inv = jax.lax.rsqrt(jnp.maximum(sq, jnp.float32(EPS * EPS)))  # (1, tile_c)
    o_ref[...] = (x * inv).astype(o_ref.dtype)          # one broadcast multiply


def coors_norm(coors, *, tile_c=2048):
    """coors: (..., D). Returns coors / clamp(||coors||_2 over last axis, eps)."""
    orig_shape = coors.shape
    D = orig_shape[-1]
    x2d = coors.reshape(-1, D)
    N = x2d.shape[0]

    # Lane-dense transposed layout: (D, N) with N on the 128-wide lane axis.
    x_t = x2d.T

    tile = min(tile_c, _round_up(N, 128))               # lane-aligned tile
    n_total = _round_up(N, tile)
    if n_total != N:
        # Zero padding is safe: ||0|| -> clamped to eps -> 0 / eps = 0.
        x_t = jnp.pad(x_t, ((0, 0), (0, n_total - N)))

    out_t = pl.pallas_call(
        _coors_norm_kernel,
        out_shape=jax.ShapeDtypeStruct((D, n_total), coors.dtype),
        grid_spec=pltpu.PrefetchScalarGridSpec(
            num_scalar_prefetch=0,
            grid=(n_total // tile,),
            in_specs=[pl.BlockSpec((D, tile), lambda i: (0, i))],
            out_specs=pl.BlockSpec((D, tile), lambda i: (0, i)),
        ),
        compiler_params=pltpu.CompilerParams(
            dimension_semantics=("parallel",),
        ),
    )(x_t)

    return out_t[:, :N].T.reshape(orig_shape)


def coors_norm_ref(coors):
    norm = jnp.linalg.norm(coors, axis=-1, keepdims=True)
    return coors / jnp.maximum(norm, EPS)


if __name__ == "__main__":
    key = jax.random.PRNGKey(0)
    k1, k2 = jax.random.split(key)

    # Small shapes matching typical CoorsNorm usage: N nodes with 3-D coords.
    # Case 1: lane-aligned N.
    N1, D = 128, 3
    c1 = jax.random.normal(k1, (N1, D), dtype=jnp.float32)
    o1 = jax.block_until_ready(coors_norm(c1))
    r1 = coors_norm_ref(c1)
    assert o1.shape == c1.shape and o1.dtype == c1.dtype
    assert jnp.allclose(o1, r1, atol=1e-5, rtol=1e-5)

    # Case 2: N not a multiple of 128 (exercises the padding path).
    N2 = 300
    c2 = jax.random.normal(k2, (N2, D), dtype=jnp.float32)
    o2 = jax.block_until_ready(coors_norm(c2))
    r2 = coors_norm_ref(c2)
    assert o2.shape == c2.shape and o2.dtype == c2.dtype
    assert jnp.allclose(o2, r2, atol=1e-5, rtol=1e-5)

    print("KERNEL_OK")
</pallas_src>

<mosaic_0001>
module attributes {stable_mosaic.version = 11 : i64} {
  func.func @_coors_norm_kernel(%arg0: i32, %arg1: memref<3x128xf32, #tpu.memory_space<vmem>>, %arg2: memref<3x128xf32, #tpu.memory_space<vmem>>) attributes {dimension_semantics = [#tpu.dimension_semantics<parallel>], iteration_bounds = array<i64: 1>, scalar_prefetch = 0 : i64, scratch_operands = 0 : i64, tpu.core_type = #tpu.core_type<tc>, window_params = [{transform_indices = @transform_0, window_bounds = array<i64: 3, 128>}, {transform_indices = @transform_1, window_bounds = array<i64: 3, 128>}]} {
    %c0 = arith.constant 0 : index
    %c0_0 = arith.constant 0 : index
    %0 = vector.load %arg1[%c0, %c0_0] : memref<3x128xf32, #tpu.memory_space<vmem>>, vector<3x128xf32>
    %1 = vector.extract_strided_slice %0 {offsets = [0, 0], sizes = [1, 128], strides = [1, 1]} : vector<3x128xf32> to vector<1x128xf32>
    %2 = vector.extract_strided_slice %0 {offsets = [0, 0], sizes = [1, 128], strides = [1, 1]} : vector<3x128xf32> to vector<1x128xf32>
    %3 = arith.mulf %1, %2 : vector<1x128xf32>
    %4 = vector.extract_strided_slice %0 {offsets = [1, 0], sizes = [1, 128], strides = [1, 1]} : vector<3x128xf32> to vector<1x128xf32>
    %5 = vector.extract_strided_slice %0 {offsets = [1, 0], sizes = [1, 128], strides = [1, 1]} : vector<3x128xf32> to vector<1x128xf32>
    %6 = arith.mulf %4, %5 : vector<1x128xf32>
    %7 = arith.addf %3, %6 : vector<1x128xf32>
    %8 = vector.extract_strided_slice %0 {offsets = [2, 0], sizes = [1, 128], strides = [1, 1]} : vector<3x128xf32> to vector<1x128xf32>
    %9 = vector.extract_strided_slice %0 {offsets = [2, 0], sizes = [1, 128], strides = [1, 1]} : vector<3x128xf32> to vector<1x128xf32>
    %10 = arith.mulf %8, %9 : vector<1x128xf32>
    %11 = arith.addf %7, %10 : vector<1x128xf32>
    %cst = arith.constant 9.99999996E-13 : f32
    %12 = vector.broadcast %cst : f32 to vector<1x128xf32>
    %13 = arith.maximumf %11, %12 : vector<1x128xf32>
    %14 = math.rsqrt %13 : vector<1x128xf32>
    %15 = vector.broadcast %14 : vector<1x128xf32> to vector<3x128xf32>
    %16 = arith.mulf %0, %15 : vector<3x128xf32>
    %c0_1 = arith.constant 0 : index
    %c0_2 = arith.constant 0 : index
    %17 = vector.load %arg2[%c0_1, %c0_2] : memref<3x128xf32, #tpu.memory_space<vmem>>, vector<3x128xf32>
    tpu.vector_store %arg2[%c0_1, %c0_2], %16 {strides = array<i32>} : memref<3x128xf32, #tpu.memory_space<vmem>>, vector<3x128xf32>,
    return
  }
  func.func @transform_0(%arg0: i32) -> (i32, i32) {
    %c0_i32 = arith.constant 0 : i32
    %c0_i32_0 = arith.constant 0 : i32
    return %c0_i32, %arg0 : i32, i32
  }
  func.func @transform_1(%arg0: i32) -> (i32, i32) {
    %c0_i32 = arith.constant 0 : i32
    %c0_i32_0 = arith.constant 0 : i32
    return %c0_i32, %arg0 : i32, i32
  }
}

</mosaic_0001>

<llo_original>
// kernel: tpu_custom_call.1
$region0: #{tpu_custom_call.1}
  #allocation0 [shape = 'u32[]', space=smem, size = 0x4, offset = 0x4, fixed_abs, tag = 'smem constant byte address 0x4 - core index']
  #allocation1 [shape = 'u32[144,128]{1,0:T(1,128)}', space=vmem, size = 0x12000, scoped, tag = 'internal scratch']
  %s0 = inlined_call_operand.hbm [shape: f32[3,128], index: 0, kind: input, shape index: {}]
  %s1 = inlined_call_operand.hbm [shape: f32[3,128], index: 1, kind: output, shape index: {}]
  %s2 = sld [smem:[#allocation0]]
  $region18: #{tpu_custom_call.1} parent=0
    _
  %s4 = ssub.s32 1, %s2
  %s5 = scalar_select 0, %s4, %s2
  $region1: #{tpu_custom_call.1} parent=0
    #allocation2 [shape = 'u8[2048]{0}', space=vmem, size = 0x800, scoped, tag = 'input window, operand 0, single buffered']
    #allocation3 [shape = 's32[1]{0}', space=sflag, size = 0x4, scoped, tag = 'scoped memory for tpu_custom_call.1']
    #allocation4 [shape = 's32[1]{0}', space=sflag, size = 0x4, scoped, tag = 'scoped memory for tpu_custom_call.1']
    #allocation5 [shape = 'u8[2048]{0}', space=vmem, size = 0x800, scoped, tag = 'output window, operand 0, single buffered']
    %6 = vsyncpa [#allocation3], 0
    %7 = vsyncpa [#allocation4], 0
    // Predicated region
    $region2: #{tpu_custom_call.1} parent=1 // pred_check
      _
    $region3: #{tpu_custom_call.1} parent=1 // pred_check_branch
      %9 = sbr.rel (0) target = $region5
    $region4: #{tpu_custom_call.1} parent=1 // pred_region
      %s11 = ssub.s32 64, 64
      %12 = vsyncadd [#allocation3], %s11
      %s14 = sshll.u32 [#allocation2], 4
      %s15 = int_to_ptr.vmem [resolvable:$true] %s14
      %17 = dma.hbm_to_vmem [thread:$0]  %s0, 64, %s15, [#allocation3]
    $region5: #{tpu_custom_call.1} parent=1 // pred_fallthru
      _
    // Predicated region
    $region6: #{tpu_custom_call.1} parent=1 // pred_check
      _
    $region7: #{tpu_custom_call.1} parent=1 // pred_check_branch
      %19 = sbr.rel (0) target = $region9
    $region8: #{tpu_custom_call.1} parent=1 // pred_region
      %20 = dma.done [#allocation3], 64
    $region9: #{tpu_custom_call.1} parent=1 // pred_fallthru
      _
    %v21 = vld [vmem:[#allocation2] sm:$0x7]
    %v22 = vmul.f32 %v21, %v21
    %v24 = vrot.slane %v22, 1
    %v26 = vadd.f32 %v22, %v24
    %v27 = vrot.slane %v22, 2
    %v29 = vadd.f32 %v26, %v27
    %v30 = vmax.f32 %v29, 1e-12
    %v31 = vrsqrt.pop %v30
    %v32 = vlaneseq
    %v33 = vshrl.u32 %v32, 7
    %v34 = vsub.s32 0, %v33
    %v35 = vrot.slane %v31, %v34
    %v36 = vmul.f32 %v21, %v35
    %37 = vst [vmem:[#allocation5] sm:$0x7] %v36
    // Predicated region
    $region10: #{tpu_custom_call.1} parent=1 // pred_check
      _
    $region11: #{tpu_custom_call.1} parent=1 // pred_check_branch
      %39 = sbr.rel (0) target = $region13
    $region12: #{tpu_custom_call.1} parent=1 // pred_region
      %s41 = ssub.s32 64, 64
      %42 = vsyncadd [#allocation4], %s41
      %s44 = sshll.u32 [#allocation5], 4
      %s45 = int_to_ptr.vmem [resolvable:$true] %s44
      %47 = dma.vmem_to_hbm [thread:$0]  %s45, 64, %s1, [#allocation4]
    $region13: #{tpu_custom_call.1} parent=1 // pred_fallthru
      _
    // Predicated region
    $region14: #{tpu_custom_call.1} parent=1 // pred_check
      _
    $region15: #{tpu_custom_call.1} parent=1 // pred_check_branch
      %49 = sbr.rel (0) target = $region17
    $region16: #{tpu_custom_call.1} parent=1 // pred_region
      %50 = dma.done [#allocation4], 64
    $region17: #{tpu_custom_call.1} parent=1 // pred_fallthru
      _
    %51 = vsyncpa [#allocation3], 1
    %52 = vsyncpa [#allocation4], 1

</llo_original>
